<compile_context>
chip_gen: v5e
topology: v5e:2x2
jax: 0.10.0
libtpu: 0.0.40
codegen_flags: <defaults>
</compile_context>

<pallas_src>
import functools

import jax
import jax.numpy as jnp
from jax import lax
from jax.experimental import pallas as pl
from jax.experimental.pallas import tpu as pltpu


def _round_up(n, m):
    return ((n + m - 1) // m) * m


def _pairwise_kernel(xi_ref, xj_ref, sqc_ref, sqr_ref, tc_ref, tr_ref, cv_ref,
                     same_ref, tot_ref, *, use_bf16_gram):
    """One (T, T) tile of the implicit (N, N) pairwise matrix.

    grid = (row tiles i  [parallel], column tiles j  [arbitrary / reduction]).
    Outputs (block index (i, 0), resident across j) accumulate per-row sums:
      same_ref : sum_j same_mask[i,j] * ir[i,j]
      tot_ref  : sum_j col_valid[j]   * ir[i,j]
    """
    j = pl.program_id(1)

    @pl.when(j == 0)
    def _init():
        same_ref[...] = jnp.zeros_like(same_ref)
        tot_ref[...] = jnp.zeros_like(tot_ref)

    xi = xi_ref[...]                                   # (T, Dp) f32
    xj = xj_ref[...]                                   # (T, Dp) f32
    if use_bf16_gram:                                  # v6e/v7x MXU fast path
        xi = xi.astype(jnp.bfloat16)
        xj = xj.astype(jnp.bfloat16)

    # NT dot: contract the feature axis of both operands (no transpose).
    gram = lax.dot_general(xi, xj,
                           dimension_numbers=(((1,), (1,)), ((), ())),
                           preferred_element_type=jnp.float32)      # (T, T)

    # input_result tile: |x_i|^2 + |x_j|^2 + 2 <x_i, x_j>
    ir = sqc_ref[...] + sqr_ref[...] + 2.0 * gram                   # (T, T)

    colv = cv_ref[...]                                              # (1, T) f32
    same_f = jnp.where(tc_ref[...] == tr_ref[...], colv, 0.0)       # (T, T)

    same_ref[...] += jnp.sum(same_f * ir, axis=1, keepdims=True)    # (T, 1)
    tot_ref[...] += jnp.sum(colv * ir, axis=1, keepdims=True)       # (T, 1)


def make_matrix_loss(interval, tile=None, use_bf16_gram=False):
    """Returns matrix_loss(x, target) -> scalar f32 loss (MatrixLoss.forward)."""

    def matrix_loss(x, target):
        x = jnp.asarray(x, jnp.float32)
        t = jnp.asarray(target, jnp.float32).reshape(-1, 1)
        n, d = x.shape
        assert t.shape[0] == n

        # ---- layout: lane-dense feature dim; square row/col tiles dividing Np ----
        dp = _round_up(max(d, 1), 128)
        if tile is None:
            tsz = 256 if n > 256 else _round_up(max(n, 1), 8)
        else:
            tsz = tile
        np_ = _round_up(n, tsz)
        assert tsz % 8 == 0
        if np_ > tsz:
            assert tsz % 128 == 0, "multi-tile grids need multiple-of-128 tiles"
        num_t = np_ // tsz

        # Zero pad: does not change |x|^2 or the Gram tile; padded rows/cols are
        # excluded via the column-validity mask and the [:n] slice below.
        x_p = jnp.pad(x, ((0, np_ - n), (0, dp - d)))
        sq_col = jnp.sum(x_p * x_p, axis=1, keepdims=True)            # (Np, 1)
        sq_row = sq_col.reshape(1, np_)                               # (1, Np)
        t_col = jnp.pad(t, ((0, np_ - n), (0, 0)))                    # (Np, 1)
        t_row = t_col.reshape(1, np_)                                 # (1, Np)
        colv = (jnp.arange(np_, dtype=jnp.int32) < n)
        colv = colv.astype(jnp.float32).reshape(1, np_)               # (1, Np)

        kernel = functools.partial(_pairwise_kernel, use_bf16_gram=use_bf16_gram)

        same_sum, tot_sum = pl.pallas_call(
            kernel,
            out_shape=(jax.ShapeDtypeStruct((np_, 1), jnp.float32),
                       jax.ShapeDtypeStruct((np_, 1), jnp.float32)),
            grid_spec=pltpu.PrefetchScalarGridSpec(
                num_scalar_prefetch=0,
                grid=(num_t, num_t),
                in_specs=[
                    pl.BlockSpec((tsz, dp), lambda i, j: (i, 0)),   # x rows, tile i
                    pl.BlockSpec((tsz, dp), lambda i, j: (j, 0)),   # x rows, tile j
                    pl.BlockSpec((tsz, 1), lambda i, j: (i, 0)),    # |x_i|^2 column
                    pl.BlockSpec((1, tsz), lambda i, j: (0, j)),    # |x_j|^2 row
                    pl.BlockSpec((tsz, 1), lambda i, j: (i, 0)),    # labels (column)
                    pl.BlockSpec((1, tsz), lambda i, j: (0, j)),    # labels (row)
                    pl.BlockSpec((1, tsz), lambda i, j: (0, j)),    # column validity
                ],
                out_specs=[
                    pl.BlockSpec((tsz, 1), lambda i, j: (i, 0)),    # same-masked row sums
                    pl.BlockSpec((tsz, 1), lambda i, j: (i, 0)),    # total row sums
                ],
            ),
            compiler_params=pltpu.CompilerParams(
                # Row tiles are fully independent (per-row accumulators live in
                # the output blocks) -> "parallel" row axis (v7x megacore).
                # Column axis is the reduction -> "arbitrary", last in the grid.
                dimension_semantics=("parallel", "arbitrary"),
                vmem_limit_bytes=32 * 1024 * 1024,
            ),
        )(x_p, x_p, sq_col, sq_row, t_col, t_row, colv)

        # ---- O(N) tail (means, margin, hinge, final scalar) in the same jit ----
        inv_n = 1.0 / n
        same_d = same_sum[:n, 0] * inv_n              # mean over the real N columns
        diff_d = tot_sum[:n, 0] * inv_n - same_d      # diff mask is implicit
        md = interval + same_d - diff_d
        mm = (md > 0).astype(jnp.float32)
        ml = jnp.sum(md * mm)
        ms = jnp.sum(mm)
        base = jnp.mean(same_d)
        # Data-dependent torch `if` expressed as a select (same semantics).
        return jnp.where(ms > 0.0, base + ml / jnp.maximum(ms, 1.0), base)

    return jax.jit(matrix_loss)


def matrix_loss_ref(x, t, interval):
    # Pure-JAX reference mirroring the PyTorch forward literally.
    x = jnp.asarray(x, jnp.float32)
    t = jnp.asarray(t, jnp.float32).reshape(-1, 1)
    ir = jnp.sum((x[:, None, :] + x[None, :, :]) ** 2, axis=2)  # (N, N)
    td = t - t.T
    same = (td == 0).astype(jnp.float32)
    diff = (td != 0).astype(jnp.float32)
    same_d = jnp.mean(same * ir, axis=1)
    diff_d = jnp.mean(diff * ir, axis=1)
    md = interval + same_d - diff_d
    mm = (md > 0).astype(jnp.float32)
    ml = jnp.sum(md * mm)
    ms = jnp.sum(mm)
    base = jnp.mean(same_d)
    return jnp.where(ms > 0, base + ml / jnp.maximum(ms, 1.0), base)


if __name__ == "__main__":
    interval = 1.0

    # Test 1: small shapes consistent with the module (N=8 samples, D=32 feats).
    key = jax.random.PRNGKey(0)
    kx, kt = jax.random.split(key)
    x1 = jax.random.normal(kx, (8, 32), dtype=jnp.float32)
    t1 = jax.random.randint(kt, (8, 1), 0, 3).astype(jnp.float32)
    loss_fn = make_matrix_loss(interval)
    got1 = jax.block_until_ready(loss_fn(x1, t1))
    want1 = matrix_loss_ref(x1, t1, interval)
    assert jnp.allclose(got1, want1, rtol=1e-4, atol=1e-4), (got1, want1)

    # Test 2: ragged shapes -- exercises row/column/feature zero-padding + masks.
    k3, k4, k5, k6 = jax.random.split(jax.random.PRNGKey(1), 4)
    x2 = jax.random.normal(k3, (13, 20), dtype=jnp.float32)
    t2 = jax.random.randint(k4, (13, 1), 0, 4).astype(jnp.float32)
    got2 = jax.block_until_ready(loss_fn(x2, t2))
    want2 = matrix_loss_ref(x2, t2, interval)
    assert jnp.allclose(got2, want2, rtol=1e-4, atol=1e-4), (got2, want2)

    # Test 3: multi-tile 2x2 grid (tile=128) -- exercises per-row accumulation
    # across the j (reduction) axis and independent ("parallel") row tiles.
    x3 = jax.random.normal(k5, (200, 20), dtype=jnp.float32)
    t3 = jax.random.randint(k6, (200, 1), 0, 5).astype(jnp.float32)
    loss_fn_tiled = make_matrix_loss(interval, tile=128)
    got3 = jax.block_until_ready(loss_fn_tiled(x3, t3))
    want3 = matrix_loss_ref(x3, t3, interval)
    assert jnp.allclose(got3, want3, rtol=1e-4, atol=1e-3), (got3, want3)

    print("KERNEL_OK")
</pallas_src>

<mosaic_0001>
module attributes {stable_mosaic.version = 11 : i64} {
  func.func @_pairwise_kernel(%arg0: i32, %arg1: i32, %arg2: memref<8x128xf32, #tpu.memory_space<vmem>>, %arg3: memref<8x128xf32, #tpu.memory_space<vmem>>, %arg4: memref<8x1xf32, #tpu.memory_space<vmem>>, %arg5: memref<1x8xf32, #tpu.memory_space<vmem>>, %arg6: memref<8x1xf32, #tpu.memory_space<vmem>>, %arg7: memref<1x8xf32, #tpu.memory_space<vmem>>, %arg8: memref<1x8xf32, #tpu.memory_space<vmem>>, %arg9: memref<8x1xf32, #tpu.memory_space<vmem>>, %arg10: memref<8x1xf32, #tpu.memory_space<vmem>>) attributes {dimension_semantics = [#tpu.dimension_semantics<parallel>, #tpu.dimension_semantics<arbitrary>], iteration_bounds = array<i64: 1, 1>, scalar_prefetch = 0 : i64, scratch_operands = 0 : i64, tpu.core_type = #tpu.core_type<tc>, window_params = [{transform_indices = @transform_0, window_bounds = array<i64: 8, 128>}, {transform_indices = @transform_1, window_bounds = array<i64: 8, 128>}, {transform_indices = @transform_2, window_bounds = array<i64: 8, 1>}, {transform_indices = @transform_3, window_bounds = array<i64: 1, 8>}, {transform_indices = @transform_4, window_bounds = array<i64: 8, 1>}, {transform_indices = @transform_5, window_bounds = array<i64: 1, 8>}, {transform_indices = @transform_6, window_bounds = array<i64: 1, 8>}, {transform_indices = @transform_7, window_bounds = array<i64: 8, 1>}, {transform_indices = @transform_8, window_bounds = array<i64: 8, 1>}]} {
    %c0_i32 = arith.constant 0 : i32
    %0 = arith.cmpi eq, %arg1, %c0_i32 : i32
    %1 = arith.extui %0 : i1 to i32
    %c0_i32_0 = arith.constant 0 : i32
    %2 = arith.cmpi ne, %1, %c0_i32_0 : i32
    scf.if %2 {
      %cst_26 = arith.constant 0.000000e+00 : f32
      %37 = vector.broadcast %cst_26 : f32 to vector<8x1xf32>
      %c0_27 = arith.constant 0 : index
      %c0_28 = arith.constant 0 : index
      %38 = vector.load %arg9[%c0_27, %c0_28] : memref<8x1xf32, #tpu.memory_space<vmem>>, vector<8x1xf32>
      tpu.vector_store %arg9[%c0_27, %c0_28], %37 {strides = array<i32>} : memref<8x1xf32, #tpu.memory_space<vmem>>, vector<8x1xf32>,
      %cst_29 = arith.constant 0.000000e+00 : f32
      %39 = vector.broadcast %cst_29 : f32 to vector<8x1xf32>
      %c0_30 = arith.constant 0 : index
      %c0_31 = arith.constant 0 : index
      %40 = vector.load %arg10[%c0_30, %c0_31] : memref<8x1xf32, #tpu.memory_space<vmem>>, vector<8x1xf32>
      tpu.vector_store %arg10[%c0_30, %c0_31], %39 {strides = array<i32>} : memref<8x1xf32, #tpu.memory_space<vmem>>, vector<8x1xf32>,
    } else {
    }
    %c0 = arith.constant 0 : index
    %c0_1 = arith.constant 0 : index
    %3 = vector.load %arg2[%c0, %c0_1] : memref<8x128xf32, #tpu.memory_space<vmem>>, vector<8x128xf32>
    %c0_2 = arith.constant 0 : index
    %c0_3 = arith.constant 0 : index
    %4 = vector.load %arg3[%c0_2, %c0_3] : memref<8x128xf32, #tpu.memory_space<vmem>>, vector<8x128xf32>
    %cst = arith.constant dense<0.000000e+00> : vector<8x8xf32>
    %5 = tpu.matmul %3, %4, %cst {dimension_numbers = #tpu.dot_dimension_numbers<[1], [1], [0], [0], [0, 0, 1, 0], [], []>} : vector<8x128xf32>, vector<8x128xf32>, vector<8x8xf32> -> vector<8x8xf32>
    %c0_4 = arith.constant 0 : index
    %c0_5 = arith.constant 0 : index
    %6 = vector.load %arg4[%c0_4, %c0_5] : memref<8x1xf32, #tpu.memory_space<vmem>>, vector<8x1xf32>
    %c0_6 = arith.constant 0 : index
    %c0_7 = arith.constant 0 : index
    %7 = vector.load %arg5[%c0_6, %c0_7] : memref<1x8xf32, #tpu.memory_space<vmem>>, vector<1x8xf32>
    %8 = vector.broadcast %6 : vector<8x1xf32> to vector<8x8xf32>
    %9 = vector.broadcast %7 : vector<1x8xf32> to vector<8x8xf32>
    %10 = arith.addf %8, %9 : vector<8x8xf32>
    %cst_8 = arith.constant 2.000000e+00 : f32
    %11 = vector.broadcast %cst_8 : f32 to vector<8x8xf32>
    %12 = arith.mulf %11, %5 : vector<8x8xf32>
    %13 = arith.addf %10, %12 : vector<8x8xf32>
    %c0_9 = arith.constant 0 : index
    %c0_10 = arith.constant 0 : index
    %14 = vector.load %arg8[%c0_9, %c0_10] : memref<1x8xf32, #tpu.memory_space<vmem>>, vector<1x8xf32>
    %c0_11 = arith.constant 0 : index
    %c0_12 = arith.constant 0 : index
    %15 = vector.load %arg6[%c0_11, %c0_12] : memref<8x1xf32, #tpu.memory_space<vmem>>, vector<8x1xf32>
    %c0_13 = arith.constant 0 : index
    %c0_14 = arith.constant 0 : index
    %16 = vector.load %arg7[%c0_13, %c0_14] : memref<1x8xf32, #tpu.memory_space<vmem>>, vector<1x8xf32>
    %17 = vector.broadcast %15 : vector<8x1xf32> to vector<8x8xf32>
    %18 = vector.broadcast %16 : vector<1x8xf32> to vector<8x8xf32>
    %19 = arith.cmpf oeq, %17, %18 : vector<8x8xf32>
    %cst_15 = arith.constant 0.000000e+00 : f32
    %20 = vector.shape_cast %14 : vector<1x8xf32> to vector<1x8xf32>
    %21 = vector.broadcast %20 : vector<1x8xf32> to vector<8x8xf32>
    %22 = vector.broadcast %cst_15 : f32 to vector<8x8xf32>
    %23 = arith.select %19, %21, %22 : vector<8x8xi1>, vector<8x8xf32>
    %c0_16 = arith.constant 0 : index
    %c0_17 = arith.constant 0 : index
    %24 = vector.load %arg9[%c0_16, %c0_17] : memref<8x1xf32, #tpu.memory_space<vmem>>, vector<8x1xf32>
    %25 = arith.mulf %23, %13 : vector<8x8xf32>
    %cst_18 = arith.constant dense<0.000000e+00> : vector<8xf32>
    %26 = vector.multi_reduction <add>, %25, %cst_18 [1] : vector<8x8xf32> to vector<8xf32>
    %27 = vector.shape_cast %26 : vector<8xf32> to vector<8x1xf32>
    %28 = arith.addf %24, %27 : vector<8x1xf32>
    %c0_19 = arith.constant 0 : index
    %c0_20 = arith.constant 0 : index
    %29 = vector.load %arg9[%c0_19, %c0_20] : memref<8x1xf32, #tpu.memory_space<vmem>>, vector<8x1xf32>
    tpu.vector_store %arg9[%c0_19, %c0_20], %28 {strides = array<i32>} : memref<8x1xf32, #tpu.memory_space<vmem>>, vector<8x1xf32>,
    %c0_21 = arith.constant 0 : index
    %c0_22 = arith.constant 0 : index
    %30 = vector.load %arg10[%c0_21, %c0_22] : memref<8x1xf32, #tpu.memory_space<vmem>>, vector<8x1xf32>
    %31 = vector.broadcast %14 : vector<1x8xf32> to vector<8x8xf32>
    %32 = arith.mulf %31, %13 : vector<8x8xf32>
    %cst_23 = arith.constant dense<0.000000e+00> : vector<8xf32>
    %33 = vector.multi_reduction <add>, %32, %cst_23 [1] : vector<8x8xf32> to vector<8xf32>
    %34 = vector.shape_cast %33 : vector<8xf32> to vector<8x1xf32>
    %35 = arith.addf %30, %34 : vector<8x1xf32>
    %c0_24 = arith.constant 0 : index
    %c0_25 = arith.constant 0 : index
    %36 = vector.load %arg10[%c0_24, %c0_25] : memref<8x1xf32, #tpu.memory_space<vmem>>, vector<8x1xf32>
    tpu.vector_store %arg10[%c0_24, %c0_25], %35 {strides = array<i32>} : memref<8x1xf32, #tpu.memory_space<vmem>>, vector<8x1xf32>,
    return
  }
  func.func @transform_0(%arg0: i32, %arg1: i32) -> (i32, i32) {
    %c0_i32 = arith.constant 0 : i32
    %c0_i32_0 = arith.constant 0 : i32
    return %arg0, %c0_i32 : i32, i32
  }
  func.func @transform_1(%arg0: i32, %arg1: i32) -> (i32, i32) {
    %c0_i32 = arith.constant 0 : i32
    %c0_i32_0 = arith.constant 0 : i32
    return %arg1, %c0_i32 : i32, i32
  }
  func.func @transform_2(%arg0: i32, %arg1: i32) -> (i32, i32) {
    %c0_i32 = arith.constant 0 : i32
    %c0_i32_0 = arith.constant 0 : i32
    return %arg0, %c0_i32 : i32, i32
  }
  func.func @transform_3(%arg0: i32, %arg1: i32) -> (i32, i32) {
    %c0_i32 = arith.constant 0 : i32
    %c0_i32_0 = arith.constant 0 : i32
    return %c0_i32, %arg1 : i32, i32
  }
  func.func @transform_4(%arg0: i32, %arg1: i32) -> (i32, i32) {
    %c0_i32 = arith.constant 0 : i32
    %c0_i32_0 = arith.constant 0 : i32
    return %arg0, %c0_i32 : i32, i32
  }
  func.func @transform_5(%arg0: i32, %arg1: i32) -> (i32, i32) {
    %c0_i32 = arith.constant 0 : i32
    %c0_i32_0 = arith.constant 0 : i32
    return %c0_i32, %arg1 : i32, i32
  }
  func.func @transform_6(%arg0: i32, %arg1: i32) -> (i32, i32) {
    %c0_i32 = arith.constant 0 : i32
    %c0_i32_0 = arith.constant 0 : i32
    return %c0_i32, %arg1 : i32, i32
  }
  func.func @transform_7(%arg0: i32, %arg1: i32) -> (i32, i32) {
    %c0_i32 = arith.constant 0 : i32
    %c0_i32_0 = arith.constant 0 : i32
    return %arg0, %c0_i32 : i32, i32
  }
  func.func @transform_8(%arg0: i32, %arg1: i32) -> (i32, i32) {
    %c0_i32 = arith.constant 0 : i32
    %c0_i32_0 = arith.constant 0 : i32
    return %arg0, %c0_i32 : i32, i32
  }
}

</mosaic_0001>

<llo_original>
// kernel: matrix_loss.1
$region0: #{matrix_loss.1}
  #allocation0 [shape = 'u32[]', space=smem, size = 0x4, offset = 0x4, fixed_abs, tag = 'smem constant byte address 0x4 - core index']
  #allocation1 [shape = 'u32[72,128]{1,0:T(1,128)}', space=vmem, size = 0x9000, scoped, tag = 'internal scratch']
  %s0 = inlined_call_operand.vmem [shape: f32[8,128], index: 0, kind: input, shape index: {}, may-alias: {0,1}]
  %s1 = inlined_call_operand.vmem [shape: f32[8,128], index: 1, kind: input, shape index: {}, may-alias: {0,1}]
  %s2 = inlined_call_operand.vmem [shape: f32[8,1], index: 2, kind: input, shape index: {}]
  %s3 = inlined_call_operand.vmem [shape: f32[1,8], index: 3, kind: input, shape index: {}]
  %s4 = inlined_call_operand.vmem [shape: f32[8,1], index: 4, kind: input, shape index: {}]
  %s5 = inlined_call_operand.vmem [shape: f32[1,8], index: 5, kind: input, shape index: {}]
  %s6 = inlined_call_operand.vmem [shape: f32[1,8], index: 6, kind: input, shape index: {}]
  %s7 = inlined_call_operand.vmem [shape: f32[8,1], index: 7, kind: output, shape index: {0}]
  %s8 = inlined_call_operand.vmem [shape: f32[8,1], index: 8, kind: output, shape index: {1}]
  %9 = xla_tuple %s7, %s8
  %s10 = sld [smem:[#allocation0]]
  $region50: #{matrix_loss.1} parent=0
    _
  %s12 = ssub.s32 1, %s10
  %s13 = scalar_select 0, %s12, %s10
  // Predicated region
  $region2: #{matrix_loss.1} parent=0 // pred_check
    _
  $region3: #{matrix_loss.1} parent=0 // pred_check_branch
    %15 = sbr.rel (0) target = $region5
  $region4: #{matrix_loss.1} parent=0 // pred_region
    _
  $region5: #{matrix_loss.1} parent=0 // pred_fallthru
    _
  // Predicated region
  $region6: #{matrix_loss.1} parent=0 // pred_check
    _
  $region7: #{matrix_loss.1} parent=0 // pred_check_branch
    %17 = sbr.rel (0) target = $region9
  $region8: #{matrix_loss.1} parent=0 // pred_region
    _
  $region9: #{matrix_loss.1} parent=0 // pred_fallthru
    _
  // Predicated region
  $region10: #{matrix_loss.1} parent=0 // pred_check
    _
  $region11: #{matrix_loss.1} parent=0 // pred_check_branch
    %19 = sbr.rel (0) target = $region13
  $region12: #{matrix_loss.1} parent=0 // pred_region
    _
  $region13: #{matrix_loss.1} parent=0 // pred_fallthru
    _
  // Predicated region
  $region14: #{matrix_loss.1} parent=0 // pred_check
    _
  $region15: #{matrix_loss.1} parent=0 // pred_check_branch
    %21 = sbr.rel (0) target = $region17
  $region16: #{matrix_loss.1} parent=0 // pred_region
    _
  $region17: #{matrix_loss.1} parent=0 // pred_fallthru
    _
  // Predicated region
  $region18: #{matrix_loss.1} parent=0 // pred_check
    _
  $region19: #{matrix_loss.1} parent=0 // pred_check_branch
    %23 = sbr.rel (0) target = $region21
  $region20: #{matrix_loss.1} parent=0 // pred_region
    _
  $region21: #{matrix_loss.1} parent=0 // pred_fallthru
    _
  // Predicated region
  $region22: #{matrix_loss.1} parent=0 // pred_check
    _
  $region23: #{matrix_loss.1} parent=0 // pred_check_branch
    %25 = sbr.rel (0) target = $region25
  $region24: #{matrix_loss.1} parent=0 // pred_region
    _
  $region25: #{matrix_loss.1} parent=0 // pred_fallthru
    _
  // Predicated region
  $region26: #{matrix_loss.1} parent=0 // pred_check
    _
  $region27: #{matrix_loss.1} parent=0 // pred_check_branch
    %27 = sbr.rel (0) target = $region29
  $region28: #{matrix_loss.1} parent=0 // pred_region
    _
  $region29: #{matrix_loss.1} parent=0 // pred_fallthru
    _
  %p28 = scmp.eq.s32.totalorder 0, 0
  // Predicated region
  $region30: #{matrix_loss.1} parent=0 // pred_check
    %p29 = pneg %p28
  $region31: #{matrix_loss.1} parent=0 // pred_check_branch
    %31 = sbr.rel (%p29) target = $region33
  $region32: #{matrix_loss.1} parent=0 // pred_region
    %vm32 = vcmask 7168
    %33 = vst.msk [vmem:[%s7] sm:$0xff] %vm32, 0.0
    %34 = vst.msk [vmem:[%s8] sm:$0xff] %vm32, 0.0
  $region33: #{matrix_loss.1} parent=0 // pred_fallthru
    _
  %v35 = vld [vmem:[%s0] sm:$0xff]
  %v36 = vld [vmem:[%s1] sm:$0xff]
  %37 = vmatpush.xpose.msra.mxu0 0.0
  %38 = vmatpush.xpose.msra.mxu0 0.0
  %39 = vmatpush.xpose.msra.mxu0 0.0
  %40 = vmatpush.xpose.msra.mxu0 0.0
  %41 = vmatpush.xpose.msra.mxu0 0.0
  %42 = vmatpush.xpose.msra.mxu0 0.0
  %43 = vmatpush.xpose.msra.mxu0 0.0
  %44 = vmatpush.xpose.msra.mxu0 0.0
  %45 = vmatpush.xpose.msra.mxu0 0.0
  %46 = vmatpush.xpose.msra.mxu0 0.0
  %47 = vmatpush.xpose.msra.mxu0 0.0
  %48 = vmatpush.xpose.msra.mxu0 0.0
  %49 = vmatpush.xpose.msra.mxu0 0.0
  %50 = vmatpush.xpose.msra.mxu0 0.0
  %51 = vmatpush.xpose.msra.mxu0 0.0
  %52 = vmatpush.xpose.msra.mxu0 %v36
  %53 = vmatmul.f32.gmra.mxu0 %v35
  %v54 = vpop.f32.mrf.mxu0
  %v55 = vadd.f32 0.0, %v54
  %56 = vdwg.mxu0
  %v57 = vld [vmem:[%s2] sm:$0xff]
  %v58 = vld [vmem:[%s3] sm:$0x1]
  %60 = vset.pattern.permute.xlu0 0
  %61 = vperm.xlu0 %60, %v57
  %v62 = vpop.permute.xlu0 %61
  %v65 = vperm.slane %v58, 0
  %v67 = vadd.f32 %v62, %v65
  %v68 = vmul.f32 %v55, 2.0
  %v69 = vadd.f32 %v67, %v68
  %v70 = vld [vmem:[%s6] sm:$0x1]
  %v71 = vld [vmem:[%s4] sm:$0xff]
  %v72 = vld [vmem:[%s5] sm:$0x1]
  %74 = vset.pattern.permute.xlu0 0
  %75 = vperm.xlu0 %74, %v71
  %v76 = vpop.permute.xlu0 %75
  %v79 = vperm.slane %v72, 0
  %vm81 = vcmp.eq.f32.partialorder %v76, %v79
  %v83 = vperm.slane %v70, 0
  %v85 = vsel %vm81, %v83, 0.0
  %v86 = vld [vmem:[%s7] sm:$0xff]
  %v87 = vmul.f32 %v85, %v69
  %vm88 = vcmask 64512
  %v89 = vsel %vm88, %v87, 0.0
  %90 = vadd.xlane.f32.xlu0 %v89
  %v91 = vpop.xlane.xlu0 %90
  %v92 = vadd.f32 %v86, %v91
  %vm93 = vcmask 7168
  %94 = vst.msk [vmem:[%s7] sm:$0xff] %vm93, %v92
  %v95 = vld [vmem:[%s8] sm:$0xff]
  %v96 = vmul.f32 %v83, %v69
  %v97 = vsel %vm88, %v96, 0.0
  %98 = vadd.xlane.f32.xlu0 %v97
  %v99 = vpop.xlane.xlu0 %98
  %v100 = vadd.f32 %v95, %v99
  %101 = vst.msk [vmem:[%s8] sm:$0xff] %vm93, %v100
  // Predicated region
  $region34: #{matrix_loss.1} parent=0 // pred_check
    _
  $region35: #{matrix_loss.1} parent=0 // pred_check_branch
    %103 = sbr.rel (0) target = $region37
  $region36: #{matrix_loss.1} parent=0 // pred_region
    _
  $region37: #{matrix_loss.1} parent=0 // pred_fallthru
    _
  // Predicated region
  $region38: #{matrix_loss.1} parent=0 // pred_check
    _
  $region39: #{matrix_loss.1} parent=0 // pred_check_branch
    %105 = sbr.rel (0) target = $region41
  $region40: #{matrix_loss.1} parent=0 // pred_region
    _
  $region41: #{matrix_loss.1} parent=0 // pred_fallthru
    _
  // Predicated region
  $region42: #{matrix_loss.1} parent=0 // pred_check
    _
  $region43: #{matrix_loss.1} parent=0 // pred_check_branch
    %107 = sbr.rel (0) target = $region45
  $region44: #{matrix_loss.1} parent=0 // pred_region
    _
  $region45: #{matrix_loss.1} parent=0 // pred_fallthru
    _
  // Predicated region
  $region46: #{matrix_loss.1} parent=0 // pred_check
    _
  $region47: #{matrix_loss.1} parent=0 // pred_check_branch
    %109 = sbr.rel (0) target = $region49
  $region48: #{matrix_loss.1} parent=0 // pred_region
    _
  $region49: #{matrix_loss.1} parent=0 // pred_fallthru
    _

</llo_original>
